<compile_context>
chip_gen: v7x
topology: tpu7x:2x2x1
jax: 0.10.0
libtpu: 0.0.40
codegen_flags: <defaults>
</compile_context>

<pallas_src>
import jax
import jax.numpy as jnp
import numpy as np
from jax import lax
from jax.experimental import pallas as pl
from jax.experimental.pallas import tpu as pltpu


def mlp_kernel(x_ref, w1_ref, b1_ref, w2_ref, b2_ref, w3_ref, b3_ref, o_ref):
    """One (tb, inpdens) batch tile of fc1 -> ReLU -> fc2 -> ReLU -> fc3.

    x arrives f32 and is cast to bf16 on the VPU (under the input DMA); the
    two hidden matmuls run on the MXU with f32 accumulation.  fc3
    (out_features == 1) contracts dens2 of (1, dens2) against dens2 of
    (tb, dens2), so the result is a lane-dense (1, tb) row stored directly.
    """
    x = x_ref[...].astype(jnp.bfloat16)                        # (tb, inpdens)

    # fc1 + ReLU (MXU, f32 accumulate; elementwise kept in f32 for v5e VPU)
    h1 = jnp.dot(x, w1_ref[...], preferred_element_type=jnp.float32) + b1_ref[...]
    h1 = jnp.maximum(h1, 0.0).astype(jnp.bfloat16)

    # fc2 + ReLU
    h2 = jnp.dot(h1, w2_ref[...], preferred_element_type=jnp.float32) + b2_ref[...]
    h2 = jnp.maximum(h2, 0.0)                                   # (tb, dens2) f32

    # fc3: (1, dens2) . (tb, dens2)^T -> (1, tb); batch lands on lanes.
    w3 = w3_ref[...].astype(jnp.float32)                        # (1, dens2)
    y = lax.dot_general(w3, h2, (((1,), (1,)), ((), ())),
                        preferred_element_type=jnp.float32)     # (1, tb)
    y = y + b3_ref[0, 0]                                        # SMEM scalar bias
    o_ref[...] = y.reshape(o_ref.shape)                         # (1, 1, tb)


def mlp_forward(x, params, *, tb=128):
    """x: (B, inpdens) f32.  params: output of prepare_params.  Returns (B, 1) f32.

    tb = batch rows per grid step (tunable; sweep {128, 256, 512, 1024}).
    On v7x keep >= 2 (even) grid steps so both TensorCores get work; on
    v5e/v6e prefer the single largest tile that fits VMEM.
    """
    w1, b1, w2, b2, w3, b3 = (params[k] for k in ("w1", "b1", "w2", "b2", "w3", "b3"))
    B, inpdens = x.shape
    dens1 = w1.shape[1]
    dens2 = w2.shape[1]

    n_tiles = pl.cdiv(B, tb)
    b_pad = n_tiles * tb
    if b_pad != B:  # only pad when needed (avoids an extra HBM pass over x)
        x = jnp.pad(x, ((0, b_pad - B), (0, 0)))

    # One lane-dense (1, tb) row per batch tile.
    out_shape = jax.ShapeDtypeStruct((n_tiles, 1, tb), jnp.float32)

    flops = 2 * b_pad * (inpdens * dens1 + dens1 * dens2 + dens2)
    bytes_accessed = (b_pad * inpdens * 4            # x (f32 in)
                      + (w1.size + w2.size + w3.size) * 2   # bf16 weights
                      + (b1.size + b2.size + 1) * 4         # f32 biases
                      + n_tiles * tb * 4)                    # output rows

    out = pl.pallas_call(
        mlp_kernel,
        out_shape=out_shape,
        grid=(n_tiles,),
        in_specs=[
            # activations: pipelined over the batch grid (f32, cast in-kernel)
            pl.BlockSpec((tb, inpdens), lambda i: (i, 0)),        # x
            # weights / biases: constant index_map -> stay VMEM-resident.
            # TODO(synk): at large dens1/dens2 add pipeline_mode=pl.Buffered(1)
            # on these pinned blocks and/or raise vmem_limit_bytes (v7x 64 MiB
            # physical, v5e 16 MiB default scoped) so they aren't double-buffered.
            pl.BlockSpec((inpdens, dens1), lambda i: (0, 0)),     # w1 (bf16)
            pl.BlockSpec((1, dens1), lambda i: (0, 0)),           # b1 (f32)
            pl.BlockSpec((dens1, dens2), lambda i: (0, 0)),       # w2 (bf16)
            pl.BlockSpec((1, dens2), lambda i: (0, 0)),           # b2 (f32)
            pl.BlockSpec((1, dens2), lambda i: (0, 0)),           # w3 (bf16, torch layout)
            pl.BlockSpec(memory_space=pltpu.MemorySpace.SMEM),    # b3 scalar
        ],
        out_specs=pl.BlockSpec((1, 1, tb), lambda i: (i, 0, 0)),
        compiler_params=pltpu.CompilerParams(
            dimension_semantics=("parallel",),   # megacore sharding on v7x
        ),
        cost_estimate=pl.CostEstimate(
            flops=flops, transcendentals=0, bytes_accessed=bytes_accessed),
    )(x, w1, b1, w2, b2, w3, b3)

    # (n_tiles, 1, tb) row-major == flat batch order; trivial reshape + slice.
    return out.reshape(b_pad, 1)[:B]


def init_params(key, inpdens, dens1, dens2):
    """Deterministic f32 init matching nn.Linear's U(-1/sqrt(fan_in), 1/sqrt(fan_in)).
    fc1/fc2 weights stored transposed relative to PyTorch: (in, out);
    fc3 weight stored in PyTorch layout (1, dens2)."""
    ks = jax.random.split(key, 6)

    def linear(kw, kb, fan_in, fan_out, w_shape):
        bound = 1.0 / np.sqrt(fan_in)
        w = jax.random.uniform(kw, w_shape, jnp.float32, -bound, bound)
        b = jax.random.uniform(kb, (1, fan_out), jnp.float32, -bound, bound)
        return w, b

    w1, b1 = linear(ks[0], ks[1], inpdens, dens1, (inpdens, dens1))
    w2, b2 = linear(ks[2], ks[3], dens1, dens2, (dens1, dens2))
    w3, b3 = linear(ks[4], ks[5], dens2, 1, (1, dens2))
    return {"w1": w1, "b1": b1, "w2": w2, "b2": b2, "w3": w3, "b3": b3}


def prepare_params(params):
    """One-time kernel operand prep: bf16 weight copies (MXU inputs), f32 biases."""
    return {
        "w1": params["w1"].astype(jnp.bfloat16),
        "b1": params["b1"],
        "w2": params["w2"].astype(jnp.bfloat16),
        "b2": params["b2"],
        "w3": params["w3"].astype(jnp.bfloat16),
        "b3": params["b3"],
    }


def mlp_reference(x, p):
    """Pure-f32 reference matching the PyTorch module's forward (returns (B, 1))."""
    h = jnp.maximum(x @ p["w1"] + p["b1"], 0.0)
    h = jnp.maximum(h @ p["w2"] + p["b2"], 0.0)
    return h @ p["w3"].T + p["b3"]


if __name__ == "__main__":
    # Small shapes consistent with Net(inpdens, dens1, dens2); B=256 with
    # tb=128 gives 2 grid steps (both v7x TensorCores busy).
    B, inpdens, dens1, dens2 = 256, 32, 64, 32

    key = jax.random.PRNGKey(0)
    kx, kp = jax.random.split(key)
    x = jax.random.normal(kx, (B, inpdens), jnp.float32)
    params_f32 = init_params(kp, inpdens, dens1, dens2)
    params = prepare_params(params_f32)   # hoisted weight casts (once, not per call)

    out = mlp_forward(x, params, tb=128)
    out = jax.block_until_ready(out)

    ref = mlp_reference(x, params_f32)
    assert out.shape == (B, 1) and ref.shape == (B, 1)
    # bf16 operands + f32 accumulation vs f32 reference -> loose tolerance.
    np.testing.assert_allclose(np.asarray(out), np.asarray(ref), rtol=5e-2, atol=3e-2)

    print("KERNEL_OK")
</pallas_src>

<mosaic_0001>
module attributes {stable_mosaic.version = 11 : i64} {
  func.func @mlp_kernel(%arg0: i32, %arg1: memref<128x32xf32, #tpu.memory_space<vmem>>, %arg2: memref<32x64xbf16, #tpu.memory_space<vmem>>, %arg3: memref<1x64xf32, #tpu.memory_space<vmem>>, %arg4: memref<64x32xbf16, #tpu.memory_space<vmem>>, %arg5: memref<1x32xf32, #tpu.memory_space<vmem>>, %arg6: memref<1x32xbf16, #tpu.memory_space<vmem>>, %arg7: memref<1x1xf32, #tpu.memory_space<smem>>, %arg8: memref<1x1x128xf32, #tpu.memory_space<vmem>>) attributes {dimension_semantics = [#tpu.dimension_semantics<parallel>], iteration_bounds = array<i64: 2>, scalar_prefetch = 0 : i64, scratch_operands = 0 : i64, tpu.core_type = #tpu.core_type<tc>, window_params = [{transform_indices = @transform_0, window_bounds = array<i64: 128, 32>}, {pipeline_mode = #tpu.pipeline_mode<synchronous>, transform_indices = @transform_1, window_bounds = array<i64: 32, 64>}, {pipeline_mode = #tpu.pipeline_mode<synchronous>, transform_indices = @transform_2, window_bounds = array<i64: 1, 64>}, {pipeline_mode = #tpu.pipeline_mode<synchronous>, transform_indices = @transform_3, window_bounds = array<i64: 64, 32>}, {pipeline_mode = #tpu.pipeline_mode<synchronous>, transform_indices = @transform_4, window_bounds = array<i64: 1, 32>}, {pipeline_mode = #tpu.pipeline_mode<synchronous>, transform_indices = @transform_5, window_bounds = array<i64: 1, 32>}, {transform_indices = @transform_6, window_bounds = array<i64: 1, 1>}, {transform_indices = @transform_7, window_bounds = array<i64: 1, 1, 128>}]} {
    %c0 = arith.constant 0 : index
    %c0_0 = arith.constant 0 : index
    %0 = vector.load %arg1[%c0, %c0_0] : memref<128x32xf32, #tpu.memory_space<vmem>>, vector<128x32xf32>
    %1 = arith.truncf %0 : vector<128x32xf32> to vector<128x32xbf16>
    %c0_1 = arith.constant 0 : index
    %c0_2 = arith.constant 0 : index
    %2 = vector.load %arg2[%c0_1, %c0_2] : memref<32x64xbf16, #tpu.memory_space<vmem>>, vector<32x64xbf16>
    %cst = arith.constant dense<0.000000e+00> : vector<128x64xf32>
    %3 = tpu.matmul %1, %2, %cst {dimension_numbers = #tpu.dot_dimension_numbers<[1], [0], [0], [1], [0, 0, 1, 1], [], []>} : vector<128x32xbf16>, vector<32x64xbf16>, vector<128x64xf32> -> vector<128x64xf32>
    %c0_3 = arith.constant 0 : index
    %c0_4 = arith.constant 0 : index
    %4 = vector.load %arg3[%c0_3, %c0_4] : memref<1x64xf32, #tpu.memory_space<vmem>>, vector<1x64xf32>
    %5 = vector.broadcast %4 : vector<1x64xf32> to vector<128x64xf32>
    %6 = arith.addf %3, %5 : vector<128x64xf32>
    %cst_5 = arith.constant 0.000000e+00 : f32
    %7 = vector.broadcast %cst_5 : f32 to vector<128x64xf32>
    %8 = arith.maximumf %6, %7 : vector<128x64xf32>
    %9 = arith.truncf %8 : vector<128x64xf32> to vector<128x64xbf16>
    %c0_6 = arith.constant 0 : index
    %c0_7 = arith.constant 0 : index
    %10 = vector.load %arg4[%c0_6, %c0_7] : memref<64x32xbf16, #tpu.memory_space<vmem>>, vector<64x32xbf16>
    %cst_8 = arith.constant dense<0.000000e+00> : vector<128x32xf32>
    %11 = tpu.matmul %9, %10, %cst_8 {dimension_numbers = #tpu.dot_dimension_numbers<[1], [0], [0], [1], [0, 0, 1, 1], [], []>} : vector<128x64xbf16>, vector<64x32xbf16>, vector<128x32xf32> -> vector<128x32xf32>
    %c0_9 = arith.constant 0 : index
    %c0_10 = arith.constant 0 : index
    %12 = vector.load %arg5[%c0_9, %c0_10] : memref<1x32xf32, #tpu.memory_space<vmem>>, vector<1x32xf32>
    %13 = vector.broadcast %12 : vector<1x32xf32> to vector<128x32xf32>
    %14 = arith.addf %11, %13 : vector<128x32xf32>
    %cst_11 = arith.constant 0.000000e+00 : f32
    %15 = vector.broadcast %cst_11 : f32 to vector<128x32xf32>
    %16 = arith.maximumf %14, %15 : vector<128x32xf32>
    %c0_12 = arith.constant 0 : index
    %c0_13 = arith.constant 0 : index
    %17 = vector.load %arg6[%c0_12, %c0_13] : memref<1x32xbf16, #tpu.memory_space<vmem>>, vector<1x32xbf16>
    %18 = arith.extf %17 : vector<1x32xbf16> to vector<1x32xf32>
    %cst_14 = arith.constant dense<0.000000e+00> : vector<1x128xf32>
    %19 = tpu.matmul %18, %16, %cst_14 {dimension_numbers = #tpu.dot_dimension_numbers<[1], [1], [0], [0], [0, 0, 1, 0], [], []>} : vector<1x32xf32>, vector<128x32xf32>, vector<1x128xf32> -> vector<1x128xf32>
    %c0_15 = arith.constant 0 : index
    %c0_16 = arith.constant 0 : index
    %20 = memref.load %arg7[%c0_15, %c0_16] : memref<1x1xf32, #tpu.memory_space<smem>>
    %21 = vector.broadcast %20 : f32 to vector<1x128xf32>
    %22 = arith.addf %19, %21 : vector<1x128xf32>
    %23 = vector.shape_cast %22 : vector<1x128xf32> to vector<1x1x128xf32>
    %c0_17 = arith.constant 0 : index
    %c0_18 = arith.constant 0 : index
    %c0_19 = arith.constant 0 : index
    %24 = vector.load %arg8[%c0_17, %c0_18, %c0_19] : memref<1x1x128xf32, #tpu.memory_space<vmem>>, vector<1x1x128xf32>
    tpu.vector_store %arg8[%c0_17, %c0_18, %c0_19], %23 {strides = array<i32>} : memref<1x1x128xf32, #tpu.memory_space<vmem>>, vector<1x1x128xf32>,
    return
  }
  func.func @transform_0(%arg0: i32) -> (i32, i32) {
    %c0_i32 = arith.constant 0 : i32
    %c0_i32_0 = arith.constant 0 : i32
    return %arg0, %c0_i32 : i32, i32
  }
  func.func @transform_1(%arg0: i32) -> (i32, i32) {
    %c0_i32 = arith.constant 0 : i32
    %c0_i32_0 = arith.constant 0 : i32
    %c0_i32_1 = arith.constant 0 : i32
    return %c0_i32, %c0_i32_0 : i32, i32
  }
  func.func @transform_2(%arg0: i32) -> (i32, i32) {
    %c0_i32 = arith.constant 0 : i32
    %c0_i32_0 = arith.constant 0 : i32
    %c0_i32_1 = arith.constant 0 : i32
    return %c0_i32, %c0_i32_0 : i32, i32
  }
  func.func @transform_3(%arg0: i32) -> (i32, i32) {
    %c0_i32 = arith.constant 0 : i32
    %c0_i32_0 = arith.constant 0 : i32
    %c0_i32_1 = arith.constant 0 : i32
    return %c0_i32, %c0_i32_0 : i32, i32
  }
  func.func @transform_4(%arg0: i32) -> (i32, i32) {
    %c0_i32 = arith.constant 0 : i32
    %c0_i32_0 = arith.constant 0 : i32
    %c0_i32_1 = arith.constant 0 : i32
    return %c0_i32, %c0_i32_0 : i32, i32
  }
  func.func @transform_5(%arg0: i32) -> (i32, i32) {
    %c0_i32 = arith.constant 0 : i32
    %c0_i32_0 = arith.constant 0 : i32
    %c0_i32_1 = arith.constant 0 : i32
    return %c0_i32, %c0_i32_0 : i32, i32
  }
  func.func @transform_6(%arg0: i32) -> (i32, i32) {
    %c0_i32 = arith.constant 0 : i32
    %c0_i32_0 = arith.constant 0 : i32
    %c0_i32_1 = arith.constant 0 : i32
    return %c0_i32, %c0_i32_0 : i32, i32
  }
  func.func @transform_7(%arg0: i32) -> (i32, i32, i32) {
    %c0_i32 = arith.constant 0 : i32
    %c0_i32_0 = arith.constant 0 : i32
    %c0_i32_1 = arith.constant 0 : i32
    return %arg0, %c0_i32, %c0_i32_0 : i32, i32, i32
  }
}

</mosaic_0001>

<llo_original>
// kernel: tpu_custom_call.1
$region0: #{tpu_custom_call.1}
  #allocation0 [shape = 'u32[]', space=smem, size = 0x4, offset = 0x4, fixed_abs, tag = 'smem constant byte address 0x4 - core index']
  #allocation1 [shape = 'u32[144,128]{1,0:T(1,128)}', space=vmem, size = 0x12000, scoped, tag = 'internal scratch']
  #allocation2 [shape = 'f32[1,1]{1,0:T(1,128)S(6)}', space=smem, size = 0x200, scoped, tag = 'scoped memory for tpu_custom_call.1']
  %s0 = inlined_call_operand.vmem [shape: f32[256,32], index: 0, kind: input, shape index: {}]
  %s1 = inlined_call_operand.vmem [shape: bf16[32,64], index: 1, kind: input, shape index: {}]
  %s2 = inlined_call_operand.vmem [shape: f32[1,64], index: 2, kind: input, shape index: {}]
  %s3 = inlined_call_operand.vmem [shape: bf16[64,32], index: 3, kind: input, shape index: {}]
  %s4 = inlined_call_operand.vmem [shape: f32[1,32], index: 4, kind: input, shape index: {}]
  %s5 = inlined_call_operand.vmem [shape: bf16[1,32], index: 5, kind: input, shape index: {}]
  %s6 = inlined_call_operand.<no memory space> [shape: f32[1,1], index: 6, kind: input, shape index: {}]
  %s7 = inlined_call_operand.hbm [shape: f32[2,1,128], index: 7, kind: output, shape index: {}]
  %s8 = sld [smem:[#allocation0]]
  $region61: #{tpu_custom_call.1} parent=0
    _
  %s10 = ssub.s32 1, %s8
  %s11 = scalar_select 0, %s10, %s8
  %12 = sst [smem:[#allocation2]] %s6
  $region1: #{tpu_custom_call.1} parent=0
    #allocation3 [shape = 'u8[1024]{0}', space=vmem, size = 0x400, scoped, tag = 'output window, operand 0']
    #allocation4 [shape = 's32[2]{0}', space=sflag, size = 0x8, scoped, tag = 'scoped memory for tpu_custom_call.1']
    %13 = vsyncpa [#allocation4], 0
    %s14 = scalar_lea.sflag [#allocation4], 1
    %15 = vsyncpa %s14, 0
    loop: start=0, step=1, limit=4
    $region2: #{tpu_custom_call.1} parent=1 // loop_pre_header
      _
    $region3: #{tpu_custom_call.1} parent=1 // loop_header
      %s17 = sphi 0, %s21
      %p18 = scmp.ge.s32.totalorder %s17, 4
      %s27 = sphi 0, %s29
      %s30 = sphi 0, %s27
      %s31 = sphi 0, %s30
      %s47 = sphi 0, %s31
      %s51 = sphi 0, %s51
      %s53 = sphi 0, %s51
      %s54 = sphi 0, %s53
      %s68 = sphi 0, %s54
      %s72 = sphi 0, %s72
      %s74 = sphi 0, %s72
      %s75 = sphi 0, %s74
      %s89 = sphi 0, %s75
      %s93 = sphi 0, %s93
      %s95 = sphi 0, %s93
      %s96 = sphi 0, %s95
      %s110 = sphi 0, %s96
      %s114 = sphi 0, %s114
      %s116 = sphi 0, %s114
      %s117 = sphi 0, %s116
      %s131 = sphi 0, %s117
      %s135 = sphi 0, %s135
      %s137 = sphi 0, %s135
      %s138 = sphi 0, %s137
      %s152 = sphi 0, %s138
      %s156 = sphi 0, %s156
      %s158 = sphi 0, %s156
      %s159 = sphi 0, %s158
      %s173 = sphi 0, %s159
      %s179 = sphi 0, %s181
      %s182 = sphi 0, %s179
      %s183 = sphi 0, %s182
      %s199 = sphi 0, %s183
    $region4: #{tpu_custom_call.1} parent=1 // loop_header_branch
      %20 = sbr.rel (%p18) target = $region8
    $region5: #{tpu_custom_call.1} parent=1 // loop_body
      %s22 = ssub.s32 %s17, 1
      %s23 = ssub.s32 %s17, 2
      %s24 = sadd.s32 %s17, 1
      %s25 = ssub.s32 %s17, %s24
      %p26 = scmp.eq.s32.totalorder %s25, 0
      %s28 = sadd.s32 %s27, 1
      %s29 = scalar_select %p26, %s27, %s28
      %p32 = pneg %p26
      %p33 = scmp.eq.s32.totalorder %s17, 1
      %p34 = por %p32, %p33
      %p35 = scmp.ne.s32.totalorder %s27, %s30
      %p36 = scmp.eq.s32.totalorder %s17, 0
      %p37 = por %p35, %p36
      %p38 = scmp.ne.s32.totalorder %s27, %s30
      %p39 = scmp.eq.s32.totalorder %s22, 1
      %p40 = por %p38, %p39
      %p41 = scmp.ne.s32.totalorder %s30, %s31
      %p42 = scmp.eq.s32.totalorder %s22, 0
      %p43 = por %p41, %p42
      %p44 = scmp.ne.s32.totalorder %s30, %s31
      %p45 = scmp.eq.s32.totalorder %s23, 1
      %p46 = por %p44, %p45
      %p48 = scmp.ne.s32.totalorder %s31, %s47
      %p49 = scmp.eq.s32.totalorder %s23, 0
      %p50 = por %p48, %p49
      %s52 = sadd.s32 %s51, 1
      %p55 = scmp.eq.s32.totalorder %s17, 1
      %p56 = scmp.ne.s32.totalorder %s51, %s53
      %p57 = scmp.eq.s32.totalorder %s17, 0
      %p58 = por %p56, %p57
      %p59 = scmp.ne.s32.totalorder %s51, %s53
      %p60 = scmp.eq.s32.totalorder %s22, 1
      %p61 = por %p59, %p60
      %p62 = scmp.ne.s32.totalorder %s53, %s54
      %p63 = scmp.eq.s32.totalorder %s22, 0
      %p64 = por %p62, %p63
      %p65 = scmp.ne.s32.totalorder %s53, %s54
      %p66 = scmp.eq.s32.totalorder %s23, 1
      %p67 = por %p65, %p66
      %p69 = scmp.ne.s32.totalorder %s54, %s68
      %p70 = scmp.eq.s32.totalorder %s23, 0
      %p71 = por %p69, %p70
      %s73 = sadd.s32 %s72, 1
      %p76 = scmp.eq.s32.totalorder %s17, 1
      %p77 = scmp.ne.s32.totalorder %s72, %s74
      %p78 = scmp.eq.s32.totalorder %s17, 0
      %p79 = por %p77, %p78
      %p80 = scmp.ne.s32.totalorder %s72, %s74
      %p81 = scmp.eq.s32.totalorder %s22, 1
      %p82 = por %p80, %p81
      %p83 = scmp.ne.s32.totalorder %s74, %s75
      %p84 = scmp.eq.s32.totalorder %s22, 0
      %p85 = por %p83, %p84
      %p86 = scmp.ne.s32.totalorder %s74, %s75
      %p87 = scmp.eq.s32.totalorder %s23, 1
      %p88 = por %p86, %p87
      %p90 = scmp.ne.s32.totalorder %s75, %s89
      %p91 = scmp.eq.s32.totalorder %s23, 0
      %p92 = por %p90, %p91
      %s94 = sadd.s32 %s93, 1
      %p97 = scmp.eq.s32.totalorder %s17, 1
      %p98 = scmp.ne.s32.totalorder %s93, %s95
      %p99 = scmp.eq.s32.totalorder %s17, 0
      %p100 = por %p98, %p99
      %p101 = scmp.ne.s32.totalorder %s93, %s95
      %p102 = scmp.eq.s32.totalorder %s22, 1
      %p103 = por %p101, %p102
      %p104 = scmp.ne.s32.totalorder %s95, %s96
      %p105 = scmp.eq.s32.totalorder %s22, 0
      %p106 = por %p104, %p105
      %p107 = scmp.ne.s32.totalorder %s95, %s96
      %p108 = scmp.eq.s32.totalorder %s23, 1
      %p109 = por %p107, %p108
      %p111 = scmp.ne.s32.totalorder %s96, %s110
      %p112 = scmp.eq.s32.totalorder %s23, 0
      %p113 = por %p111, %p112
      %s115 = sadd.s32 %s114, 1
      %p118 = scmp.eq.s32.totalorder %s17, 1
      %p119 = scmp.ne.s32.totalorder %s114, %s116
      %p120 = scmp.eq.s32.totalorder %s17, 0
      %p121 = por %p119, %p120
      %p122 = scmp.ne.s32.totalorder %s114, %s116
      %p123 = scmp.eq.s32.totalorder %s22, 1
      %p124 = por %p122, %p123
      %p125 = scmp.ne.s32.totalorder %s116, %s117
      %p126 = scmp.eq.s32.totalorder %s22, 0
      %p127 = por %p125, %p126
      %p128 = scmp.ne.s32.totalorder %s116, %s117
      %p129 = scmp.eq.s32.totalorder %s23, 1
      %p130 = por %p128, %p129
      %p132 = scmp.ne.s32.totalorder %s117, %s131
      %p133 = scmp.eq.s32.totalorder %s23, 0
      %p134 = por %p132, %p133
      %s136 = sadd.s32 %s135, 1
      %p139 = scmp.eq.s32.totalorder %s17, 1
      %p140 = scmp.ne.s32.totalorder %s135, %s137
      %p141 = scmp.eq.s32.totalorder %s17, 0
      %p142 = por %p140, %p141
      %p143 = scmp.ne.s32.totalorder %s135, %s137
      %p144 = scmp.eq.s32.totalorder %s22, 1
      %p145 = por %p143, %p144
      %p146 = scmp.ne.s32.totalorder %s137, %s138
      %p147 = scmp.eq.s32.totalorder %s22, 0
      %p148 = por %p146, %p147
      %p149 = scmp.ne.s32.totalorder %s137, %s138
      %p150 = scmp.eq.s32.totalorder %s23, 1
      %p151 = por %p149, %p150
      %p153 = scmp.ne.s32.totalorder %s138, %s152
      %p154 = scmp.eq.s32.totalorder %s23, 0
      %p155 = por %p153, %p154
      %s157 = sadd.s32 %s156, 1
      %p160 = scmp.eq.s32.totalorder %s17, 1
      %p161 = scmp.ne.s32.totalorder %s156, %s158
      %p162 = scmp.eq.s32.totalorder %s17, 0
      %p163 = por %p161, %p162
      %p164 = scmp.ne.s32.totalorder %s156, %s158
      %p165 = scmp.eq.s32.totalorder %s22, 1
      %p166 = por %p164, %p165
      %p167 = scmp.ne.s32.totalorder %s158, %s159
      %p168 = scmp.eq.s32.totalorder %s22, 0
      %p169 = por %p167, %p168
      %p170 = scmp.ne.s32.totalorder %s158, %s159
      %p171 = scmp.eq.s32.totalorder %s23, 1
      %p172 = por %p170, %p171
      %p174 = scmp.ne.s32.totalorder %s159, %s173
      %p175 = scmp.eq.s32.totalorder %s23, 0
      %p176 = por %p174, %p175
      %s177 = ssub.s32 %s17, %s24
      %p178 = scmp.eq.s32.totalorder %s177, 0
      %s180 = sadd.s32 %s179, 1
      %s181 = scalar_select %p178, %s179, %s180
      %p184 = pneg %p178
      %p185 = scmp.eq.s32.totalorder %s17, 1
      %p186 = por %p184, %p185
      %p187 = scmp.ne.s32.totalorder %s179, %s182
      %p188 = scmp.eq.s32.totalorder %s17, 0
      %p189 = por %p187, %p188
      %p190 = scmp.ne.s32.totalorder %s179, %s182
      %p191 = scmp.eq.s32.totalorder %s22, 1
      %p192 = por %p190, %p191
      %p193 = scmp.ne.s32.totalorder %s182, %s183
      %p194 = scmp.eq.s32.totalorder %s22, 0
      %p195 = por %p193, %p194
      %p196 = scmp.ne.s32.totalorder %s182, %s183
      %p197 = scmp.eq.s32.totalorder %s23, 1
      %p198 = por %p196, %p197
      %p200 = scmp.ne.s32.totalorder %s183, %s199
      %p201 = scmp.eq.s32.totalorder %s23, 0
      %p202 = por %p200, %p201
      %p203 = scmp.le.s32.totalorder 1, %s17
      %p204 = scmp.lt.s32.totalorder %s17, 3
      %p205 = pnand %p203, %p204
      %p206 = pneg %p205
      // Predicated region
      $region9: #{tpu_custom_call.1} parent=5 // pred_check
        _
      $region10: #{tpu_custom_call.1} parent=5 // pred_check_branch
        %208 = sbr.rel (%p205) target = $region12
      $region11: #{tpu_custom_call.1} parent=5 // pred_region
        %s209 = ssub.s32 %s17, 1
        // Predicated region
        $region13: #{tpu_custom_call.1} parent=11 // pred_check
          %p210 = pneg %p64
        $region14: #{tpu_custom_call.1} parent=11 // pred_check_branch
          %212 = sbr.rel (%p210) target = $region16
        $region15: #{tpu_custom_call.1} parent=11 // pred_region
          _
        $region16: #{tpu_custom_call.1} parent=11 // pred_fallthru
          _
        // Predicated region
        $region17: #{tpu_custom_call.1} parent=11 // pred_check
          %p213 = pneg %p85
        $region18: #{tpu_custom_call.1} parent=11 // pred_check_branch
          %215 = sbr.rel (%p213) target = $region20
        $region19: #{tpu_custom_call.1} parent=11 // pred_region
          _
        $region20: #{tpu_custom_call.1} parent=11 // pred_fallthru
          _
        // Predicated region
        $region21: #{tpu_custom_call.1} parent=11 // pred_check
          %p216 = pneg %p106
        $region22: #{tpu_custom_call.1} parent=11 // pred_check_branch
          %218 = sbr.rel (%p216) target = $region24
        $region23: #{tpu_custom_call.1} parent=11 // pred_region
          _
        $region24: #{tpu_custom_call.1} parent=11 // pred_fallthru
          _
        // Predicated region
        $region25: #{tpu_custom_call.1} parent=11 // pred_check
          %p219 = pneg %p127
        $region26: #{tpu_custom_call.1} parent=11 // pred_check_branch
          %221 = sbr.rel (%p219) target = $region28
        $region27: #{tpu_custom_call.1} parent=11 // pred_region
          _
        $region28: #{tpu_custom_call.1} parent=11 // pred_fallthru
          _
        // Predicated region
        $region29: #{tpu_custom_call.1} parent=11 // pred_check
          %p222 = pneg %p148
        $region30: #{tpu_custom_call.1} parent=11 // pred_check_branch
          %224 = sbr.rel (%p222) target = $region32
        $region31: #{tpu_custom_call.1} parent=11 // pred_region
          _
        $region32: #{tpu_custom_call.1} parent=11 // pred_fallthru
          _
        // Predicated region
        $region33: #{tpu_custom_call.1} parent=11 // pred_check
          %p225 = pneg %p169
        $region34: #{tpu_custom_call.1} parent=11 // pred_check_branch
          %227 = sbr.rel (%p225) target = $region36
        $region35: #{tpu_custom_call.1} parent=11 // pred_region
          _
        $region36: #{tpu_custom_call.1} parent=11 // pred_fallthru
          _
      $region12: #{tpu_custom_call.1} parent=5 // pred_fallthru
        _
      %p228 = scmp.lt.s32.totalorder %s17, 2
      // Predicated region
      $region37: #{tpu_custom_call.1} parent=5 // pred_check
        %p229 = pneg %p228
      $region38: #{tpu_custom_call.1} parent=5 // pred_check_branch
        %231 = sbr.rel (%p229) target = $region40
      $region39: #{tpu_custom_call.1} parent=5 // pred_region
        // Predicated region
        $region41: #{tpu_custom_call.1} parent=39 // pred_check
          %p232 = pneg %p37
        $region42: #{tpu_custom_call.1} parent=39 // pred_check_branch
          %234 = sbr.rel (%p232) target = $region44
        $region43: #{tpu_custom_call.1} parent=39 // pred_region
          %s235 = smul.u32 16, %s17
          %p236 = scmp.lt.s32.totalorder %s235, 31
          %s237 = scalar_select %p236, %s235, 31
          %s238 = smul.addr %s237, 8
          %s239 = scalar_lea.vmem %s0, %s238
          %s240 = smul.u32 16, %s17
        $region44: #{tpu_custom_call.1} parent=39 // pred_fallthru
          _
      $region40: #{tpu_custom_call.1} parent=5 // pred_fallthru
        _
      %p241 = scmp.le.s32.totalorder 1, %s17
      %p242 = scmp.lt.s32.totalorder %s17, 3
      %p243 = pnand %p241, %p242
      %p244 = pneg %p243
      // Predicated region
      $region45: #{tpu_custom_call.1} parent=5 // pred_check
        _
      $region46: #{tpu_custom_call.1} parent=5 // pred_check_branch
        %246 = sbr.rel (%p243) target = $region48
      $region47: #{tpu_custom_call.1} parent=5 // pred_region
        %s247 = ssub.s32 %s17, 1
        %s248 = smul.u32 16, %s22
        %p249 = scmp.lt.s32.totalorder %s248, 31
        %s250 = scalar_select %p249, %s248, 31
        %s251 = smul.addr %s250, 8
        %s252 = scalar_lea.vmem %s0, %s251
        %p253 = pneg %p43
        %p254 = pneg %p40
        %p255 = pneg %p64
        %p256 = pneg %p61
        %p257 = pneg %p85
        %p258 = pneg %p82
        %p259 = pneg %p106
        %p260 = pneg %p103
        %p261 = pneg %p127
        %p262 = pneg %p124
        %p263 = pneg %p148
        %p264 = pneg %p145
        %p265 = pneg %p169
        %p266 = pneg %p166
        %p267 = pneg %p195
        %p268 = pneg %p192
        %s269 = sand.u32 %s182, 1
        %s270 = scalar_lea.sflag [#allocation4], %s269
        %s271 = sand.u32 %s182, 1
        %s272 = scalar_lea.vmem [#allocation3], %s271
        %s273 = smul.u32 16, %s22
        %p274 = scmp.lt.s32.totalorder %s273, 31
        %s275 = scalar_select %p274, %s273, 31
        %s276 = smul.addr %s275, 8
        %s277 = scalar_lea.vmem %s0, %s276
        %s278 = smul.u32 16, %s22
        %v280 = vld [vmem:[%s277] sm:$0xff]
        %v281 = vld [vmem:[%s277 + $0x8] sm:$0xff]
        %v282 = vld [vmem:[%s277 + $0x10] sm:$0xff]
        %v283 = vld [vmem:[%s277 + $0x18] sm:$0xff]
        %v284 = vld [vmem:[%s277 + $0x20] sm:$0xff]
        %v285 = vld [vmem:[%s277 + $0x28] sm:$0xff]
        %v286 = vld [vmem:[%s277 + $0x30] sm:$0xff]
        %v287 = vld [vmem:[%s277 + $0x38] sm:$0xff]
        %v288 = vld [vmem:[%s277 + $0x40] sm:$0xff]
        %v289 = vld [vmem:[%s277 + $0x48] sm:$0xff]
        %v290 = vld [vmem:[%s277 + $0x50] sm:$0xff]
        %v291 = vld [vmem:[%s277 + $0x58] sm:$0xff]
        %v292 = vld [vmem:[%s277 + $0x60] sm:$0xff]
        %v293 = vld [vmem:[%s277 + $0x68] sm:$0xff]
        %v294 = vld [vmem:[%s277 + $0x70] sm:$0xff]
        %v295 = vld [vmem:[%s277 + $0x78] sm:$0xff]
        %v296 = vpack.c.bf16 %v281, %v280
        %v297 = vpack.c.bf16 %v283, %v282
        %v298 = vpack.c.bf16 %v285, %v284
        %v299 = vpack.c.bf16 %v287, %v286
        %v300 = vpack.c.bf16 %v289, %v288
        %v301 = vpack.c.bf16 %v291, %v290
        %v302 = vpack.c.bf16 %v293, %v292
        %v303 = vpack.c.bf16 %v295, %v294
        %v304 = vld [vmem:[%s1] sm:$0xf]
        %v305 = vld [vmem:[%s1 + $0x4] sm:$0xf]
        %v306 = vld [vmem:[%s1 + $0x8] sm:$0xf]
        %v307 = vld [vmem:[%s1 + $0xc] sm:$0xf]
        %v308 = vld [vmem:[%s2] sm:$0x1]
        %v310 = vlaneseq
        %v311 = vshrl.u32 %v310, 7
        %v312 = vsub.s32 0, %v311
        %v313 = vrot.slane %v308, %v312
        %v319 = vunpack.c.l.b16 %v304
        %v320 = vunpack.c.l.b16 %v305
        %v321 = vunpack.c.l.b16 %v306
        %v322 = vunpack.c.l.b16 %v307
        %v323 = vpack.c.b16 %v320, %v319
        %v324 = vpack.c.b16 %v322, %v321
        %vm327 = vcmask 261120
        %v329 = vsel %vm327, %v296, 0
        %v332 = vsel %vm327, %v297, 0
        %v335 = vsel %vm327, %v298, 0
        %v338 = vsel %vm327, %v299, 0
        %v341 = vsel %vm327, %v300, 0
        %v344 = vsel %vm327, %v301, 0
        %v347 = vsel %vm327, %v302, 0
        %v350 = vsel %vm327, %v303, 0
        %352 = vmatprep.subr.bf16.mxu0 0
        %353 = vmatpush1.bf16.msra.mxu0 %v323
        %354 = vmatprep.subr.bf16.mxu0 0
        %355 = vmatpush1.bf16.msra.mxu0 %v324
        %356 = vmatprep.subr.bf16.mxu0 0
        %357 = vmatpush1.bf16.msra.mxu0 0
        %358 = vmatprep.subr.bf16.mxu0 0
        %359 = vmatpush1.bf16.msra.mxu0 0
        %360 = vmatprep.subr.bf16.mxu0 0
        %361 = vmatpush1.bf16.msra.mxu0 0
        %362 = vmatprep.subr.bf16.mxu0 0
        %363 = vmatpush1.bf16.msra.mxu0 0
        %364 = vmatprep.subr.bf16.mxu0 0
        %365 = vmatpush1.bf16.msra.mxu0 0
        %366 = vmatprep.subr.bf16.mxu0 0
        %367 = vmatpush1.bf16.msra.mxu0 0
        %368 = vmatprep.subr.bf16.mxu0 0
        %369 = vmatpush1.bf16.msra.mxu0 0
        %370 = vmatprep.subr.bf16.mxu0 0
        %371 = vmatpush1.bf16.msra.mxu0 0
        %372 = vmatprep.subr.bf16.mxu0 0
        %373 = vmatpush1.bf16.msra.mxu0 0
        %374 = vmatprep.subr.bf16.mxu0 0
        %375 = vmatpush1.bf16.msra.mxu0 0
        %376 = vmatprep.subr.bf16.mxu0 0
        %377 = vmatpush1.bf16.msra.mxu0 0
        %378 = vmatprep.subr.bf16.mxu0 0
        %379 = vmatpush1.bf16.msra.mxu0 0
        %380 = vmatprep.subr.bf16.mxu0 0
        %381 = vmatpush1.bf16.msra.mxu0 0
        %382 = vmatprep.subr.bf16.mxu0 0
        %383 = vmatpush1.bf16.msra.mxu0 0
        %384 = vmatprep.mubr.bf16.mxu0 0
        %385 = vmatmul.mubr.bf16.gmra.mrb[0].mxu0 %v329
        %v386 = vpop.f32.mrb[0].mxu0
        %v387 = vadd.f32 %v313, %v386
        %v388 = vpop.f32.mrb[0].mxu0
        %v389 = vpop.f32.mrb[0].mxu0
        %v390 = vadd.f32 %v313, %v389
        %v391 = vpop.f32.mrb[0].mxu0
        %392 = vmatprep.mubr.bf16.mxu0 0
        %393 = vmatmul.mubr.bf16.gmra.mrb[0].mxu0 %v332
        %v394 = vpop.f32.mrb[0].mxu0
        %v395 = vadd.f32 %v313, %v394
        %v396 = vpop.f32.mrb[0].mxu0
        %v397 = vpop.f32.mrb[0].mxu0
        %v398 = vadd.f32 %v313, %v397
        %v399 = vpop.f32.mrb[0].mxu0
        %400 = vmatprep.mubr.bf16.mxu0 0
        %401 = vmatmul.mubr.bf16.gmra.mrb[0].mxu0 %v335
        %v402 = vpop.f32.mrb[0].mxu0
        %v403 = vadd.f32 %v313, %v402
        %v404 = vpop.f32.mrb[0].mxu0
        %v405 = vpop.f32.mrb[0].mxu0
        %v406 = vadd.f32 %v313, %v405
        %v407 = vpop.f32.mrb[0].mxu0
        %408 = vmatprep.mubr.bf16.mxu0 0
        %409 = vmatmul.mubr.bf16.gmra.mrb[0].mxu0 %v338
        %v410 = vpop.f32.mrb[0].mxu0
        %v411 = vadd.f32 %v313, %v410
        %v412 = vpop.f32.mrb[0].mxu0
        %v413 = vpop.f32.mrb[0].mxu0
        %v414 = vadd.f32 %v313, %v413
        %v415 = vpop.f32.mrb[0].mxu0
        %416 = vmatprep.mubr.bf16.mxu0 0
        %417 = vmatmul.mubr.bf16.gmra.mrb[0].mxu0 %v341
        %v418 = vpop.f32.mrb[0].mxu0
        %v419 = vadd.f32 %v313, %v418
        %v420 = vpop.f32.mrb[0].mxu0
        %v421 = vpop.f32.mrb[0].mxu0
        %v422 = vadd.f32 %v313, %v421
        %v423 = vpop.f32.mrb[0].mxu0
        %424 = vmatprep.mubr.bf16.mxu0 0
        %425 = vmatmul.mubr.bf16.gmra.mrb[0].mxu0 %v344
        %v426 = vpop.f32.mrb[0].mxu0
        %v427 = vadd.f32 %v313, %v426
        %v428 = vpop.f32.mrb[0].mxu0
        %v429 = vpop.f32.mrb[0].mxu0
        %v430 = vadd.f32 %v313, %v429
        %v431 = vpop.f32.mrb[0].mxu0
        %432 = vmatprep.mubr.bf16.mxu0 0
        %433 = vmatmul.mubr.bf16.gmra.mrb[0].mxu0 %v347
        %v434 = vpop.f32.mrb[0].mxu0
        %v435 = vadd.f32 %v313, %v434
        %v436 = vpop.f32.mrb[0].mxu0
        %v437 = vpop.f32.mrb[0].mxu0
        %v438 = vadd.f32 %v313, %v437
        %v439 = vpop.f32.mrb[0].mxu0
        %440 = vmatprep.mubr.bf16.mxu0 0
        %441 = vmatmul.mubr.bf16.gmra.mrb[0].mxu0 %v350
        %v442 = vpop.f32.mrb[0].mxu0
        %v443 = vadd.f32 %v313, %v442
        %v444 = vpop.f32.mrb[0].mxu0
        %v445 = vpop.f32.mrb[0].mxu0
        %v446 = vadd.f32 %v313, %v445
        %v447 = vpop.f32.mrb[0].mxu0
        %448 = vdwg.mxu0
        %v449 = vmax.f32 %v387, 0.0
        %v450 = vmax.f32 %v390, 0.0
        %v451 = vmax.f32 %v395, 0.0
        %v452 = vmax.f32 %v398, 0.0
        %v453 = vmax.f32 %v403, 0.0
        %v454 = vmax.f32 %v406, 0.0
        %v455 = vmax.f32 %v411, 0.0
        %v456 = vmax.f32 %v414, 0.0
        %v457 = vmax.f32 %v419, 0.0
        %v458 = vmax.f32 %v422, 0.0
        %v459 = vmax.f32 %v427, 0.0
        %v460 = vmax.f32 %v430, 0.0
        %v461 = vmax.f32 %v435, 0.0
        %v462 = vmax.f32 %v438, 0.0
        %v463 = vmax.f32 %v443, 0.0
        %v464 = vmax.f32 %v446, 0.0
        %v465 = vpack.c.bf16 %v450, %v449
        %v466 = vpack.c.bf16 %v452, %v451
        %v467 = vpack.c.bf16 %v454, %v453
        %v468 = vpack.c.bf16 %v456, %v455
        %v469 = vpack.c.bf16 %v458, %v457
        %v470 = vpack.c.bf16 %v460, %v459
        %v471 = vpack.c.bf16 %v462, %v461
        %v472 = vpack.c.bf16 %v464, %v463
        %v473 = vld [vmem:[%s3] sm:$0xf]
        %v474 = vld [vmem:[%s3 + $0x4] sm:$0xf]
        %v475 = vld [vmem:[%s3 + $0x8] sm:$0xf]
        %v476 = vld [vmem:[%s3 + $0xc] sm:$0xf]
        %v477 = vld [vmem:[%s3 + $0x10] sm:$0xf]
        %v478 = vld [vmem:[%s3 + $0x14] sm:$0xf]
        %v479 = vld [vmem:[%s3 + $0x18] sm:$0xf]
        %v480 = vld [vmem:[%s3 + $0x1c] sm:$0xf]
        %v481 = vld [vmem:[%s4] sm:$0x1]
        %v483 = vlaneseq
        %v484 = vshrl.u32 %v483, 7
        %v485 = vsub.s32 0, %v484
        %v486 = vrot.slane %v481, %v485
        %v496 = vunpack.c.l.b16 %v473
        %v497 = vunpack.c.l.b16 %v474
        %v498 = vunpack.c.l.b16 %v475
        %v499 = vunpack.c.l.b16 %v476
        %v500 = vunpack.c.l.b16 %v477
        %v501 = vunpack.c.l.b16 %v478
        %v502 = vunpack.c.l.b16 %v479
        %v503 = vunpack.c.l.b16 %v480
        %v504 = vpack.c.b16 %v497, %v496
        %v505 = vpack.c.b16 %v499, %v498
        %v506 = vpack.c.b16 %v501, %v500
        %v507 = vpack.c.b16 %v503, %v502
        %vm512 = vcmask 523264
        %v514 = vsel %vm512, %v465, 0
        %v517 = vsel %vm512, %v466, 0
        %v520 = vsel %vm512, %v467, 0
        %v523 = vsel %vm512, %v468, 0
        %v526 = vsel %vm512, %v469, 0
        %v529 = vsel %vm512, %v470, 0
        %v532 = vsel %vm512, %v471, 0
        %v535 = vsel %vm512, %v472, 0
        %537 = vmatprep.subr.bf16.mxu0 0
        %538 = vmatpush1.bf16.msra.mxu0 %v504
        %539 = vmatprep.subr.bf16.mxu0 0
        %540 = vmatpush1.bf16.msra.mxu0 %v505
        %541 = vmatprep.subr.bf16.mxu0 0
        %542 = vmatpush1.bf16.msra.mxu0 %v506
        %543 = vmatprep.subr.bf16.mxu0 0
        %544 = vmatpush1.bf16.msra.mxu0 %v507
        %545 = vmatprep.subr.bf16.mxu0 0
        %546 = vmatpush1.bf16.msra.mxu0 0
        %547 = vmatprep.subr.bf16.mxu0 0
        %548 = vmatpush1.bf16.msra.mxu0 0
        %549 = vmatprep.subr.bf16.mxu0 0
        %550 = vmatpush1.bf16.msra.mxu0 0
        %551 = vmatprep.subr.bf16.mxu0 0
        %552 = vmatpush1.bf16.msra.mxu0 0
        %553 = vmatprep.subr.bf16.mxu0 0
        %554 = vmatpush1.bf16.msra.mxu0 0
        %555 = vmatprep.subr.bf16.mxu0 0
        %556 = vmatpush1.bf16.msra.mxu0 0
        %557 = vmatprep.subr.bf16.mxu0 0
        %558 = vmatpush1.bf16.msra.mxu0 0
        %559 = vmatprep.subr.bf16.mxu0 0
        %560 = vmatpush1.bf16.msra.mxu0 0
        %561 = vmatprep.subr.bf16.mxu0 0
        %562 = vmatpush1.bf16.msra.mxu0 0
        %563 = vmatprep.subr.bf16.mxu0 0
        %564 = vmatpush1.bf16.msra.mxu0 0
        %565 = vmatprep.subr.bf16.mxu0 0
        %566 = vmatpush1.bf16.msra.mxu0 0
        %567 = vmatprep.subr.bf16.mxu0 0
        %568 = vmatpush1.bf16.msra.mxu0 0
        %569 = vmatprep.mubr.bf16.mxu0 0
        %570 = vmatmul.mubr.bf16.gmra.mrb[0].mxu0 %v514
        %v571 = vpop.f32.mrb[0].mxu0
        %v572 = vadd.f32 %v486, %v571
        %v573 = vpop.f32.mrb[0].mxu0
        %v574 = vpop.f32.mrb[0].mxu0
        %v575 = vadd.f32 %v486, %v574
        %v576 = vpop.f32.mrb[0].mxu0
        %577 = vmatprep.mubr.bf16.mxu0 0
        %578 = vmatmul.mubr.bf16.gmra.mrb[0].mxu0 %v517
        %v579 = vpop.f32.mrb[0].mxu0
        %v580 = vadd.f32 %v486, %v579
        %v581 = vpop.f32.mrb[0].mxu0
        %v582 = vpop.f32.mrb[0].mxu0
        %v583 = vadd.f32 %v486, %v582
        %v584 = vpop.f32.mrb[0].mxu0
        %585 = vmatprep.mubr.bf16.mxu0 0
        %586 = vmatmul.mubr.bf16.gmra.mrb[0].mxu0 %v520
        %v587 = vpop.f32.mrb[0].mxu0
        %v588 = vadd.f32 %v486, %v587
        %v589 = vpop.f32.mrb[0].mxu0
        %v590 = vpop.f32.mrb[0].mxu0
        %v591 = vadd.f32 %v486, %v590
        %v592 = vpop.f32.mrb[0].mxu0
        %593 = vmatprep.mubr.bf16.mxu0 0
        %594 = vmatmul.mubr.bf16.gmra.mrb[0].mxu0 %v523
        %v595 = vpop.f32.mrb[0].mxu0
        %v596 = vadd.f32 %v486, %v595
        %v597 = vpop.f32.mrb[0].mxu0
        %v598 = vpop.f32.mrb[0].mxu0
        %v599 = vadd.f32 %v486, %v598
        %v600 = vpop.f32.mrb[0].mxu0
        %601 = vmatprep.mubr.bf16.mxu0 0
        %602 = vmatmul.mubr.bf16.gmra.mrb[0].mxu0 %v526
        %v603 = vpop.f32.mrb[0].mxu0
        %v604 = vadd.f32 %v486, %v603
        %v605 = vpop.f32.mrb[0].mxu0
        %v606 = vpop.f32.mrb[0].mxu0
        %v607 = vadd.f32 %v486, %v606
        %v608 = vpop.f32.mrb[0].mxu0
        %609 = vmatprep.mubr.bf16.mxu0 0
        %610 = vmatmul.mubr.bf16.gmra.mrb[0].mxu0 %v529
        %v611 = vpop.f32.mrb[0].mxu0
        %v612 = vadd.f32 %v486, %v611
        %v613 = vpop.f32.mrb[0].mxu0
        %v614 = vpop.f32.mrb[0].mxu0
        %v615 = vadd.f32 %v486, %v614
        %v616 = vpop.f32.mrb[0].mxu0
        %617 = vmatprep.mubr.bf16.mxu0 0
        %618 = vmatmul.mubr.bf16.gmra.mrb[0].mxu0 %v532
        %v619 = vpop.f32.mrb[0].mxu0
        %v620 = vadd.f32 %v486, %v619
        %v621 = vpop.f32.mrb[0].mxu0
        %v622 = vpop.f32.mrb[0].mxu0
        %v623 = vadd.f32 %v486, %v622
        %v624 = vpop.f32.mrb[0].mxu0
        %625 = vmatprep.mubr.bf16.mxu0 0
        %626 = vmatmul.mubr.bf16.gmra.mrb[0].mxu0 %v535
        %v627 = vpop.f32.mrb[0].mxu0
        %v628 = vadd.f32 %v486, %v627
        %v629 = vpop.f32.mrb[0].mxu0
        %v630 = vpop.f32.mrb[0].mxu0
        %v631 = vadd.f32 %v486, %v630
        %v632 = vpop.f32.mrb[0].mxu0
        %633 = vdwg.mxu0
        %v634 = vmax.f32 %v572, 0.0
        %v635 = vmax.f32 %v575, 0.0
        %v636 = vmax.f32 %v580, 0.0
        %v637 = vmax.f32 %v583, 0.0
        %v638 = vmax.f32 %v588, 0.0
        %v639 = vmax.f32 %v591, 0.0
        %v640 = vmax.f32 %v596, 0.0
        %v641 = vmax.f32 %v599, 0.0
        %v642 = vmax.f32 %v604, 0.0
        %v643 = vmax.f32 %v607, 0.0
        %v644 = vmax.f32 %v612, 0.0
        %v645 = vmax.f32 %v615, 0.0
        %v646 = vmax.f32 %v620, 0.0
        %v647 = vmax.f32 %v623, 0.0
        %v648 = vmax.f32 %v628, 0.0
        %v649 = vmax.f32 %v631, 0.0
        %v650 = vld [vmem:[%s5] sm:$0x1]
        %v651 = vunpack.c.l.bf16 %v650
        %s652 = sld [smem:[#allocation2]]
        %v653 = vstv %s652
        %v655 = vsel %vm327, %v651, 0
        %v658 = vsel %vm327, %v634, 0
        %v661 = vsel %vm327, %v635, 0
        %v664 = vsel %vm327, %v636, 0
        %v667 = vsel %vm327, %v637, 0
        %v670 = vsel %vm327, %v638, 0
        %v673 = vsel %vm327, %v639, 0
        %v676 = vsel %vm327, %v640, 0
        %v679 = vsel %vm327, %v641, 0
        %v682 = vsel %vm327, %v642, 0
        %v685 = vsel %vm327, %v643, 0
        %v688 = vsel %vm327, %v644, 0
        %v691 = vsel %vm327, %v645, 0
        %v694 = vsel %vm327, %v646, 0
        %v697 = vsel %vm327, %v647, 0
        %v700 = vsel %vm327, %v648, 0
        %v703 = vsel %vm327, %v649, 0
        %705 = vmatprep.subr.mxu0 0.0
        %706 = vmatpush1.xpose.msra.mxu0 %v658
        %707 = vmatprep.subr.mxu0 0.0
        %708 = vmatpush1.xpose.msra.mxu0 %v661
        %709 = vmatprep.subr.mxu0 0.0
        %710 = vmatpush1.xpose.msra.mxu0 %v664
        %711 = vmatprep.subr.mxu0 0.0
        %712 = vmatpush1.xpose.msra.mxu0 %v667
        %713 = vmatprep.subr.mxu0 0.0
        %714 = vmatpush1.xpose.msra.mxu0 %v670
        %715 = vmatprep.subr.mxu0 0.0
        %716 = vmatpush1.xpose.msra.mxu0 %v673
        %717 = vmatprep.subr.mxu0 0.0
        %718 = vmatpush1.xpose.msra.mxu0 %v676
        %719 = vmatprep.subr.mxu0 0.0
        %720 = vmatpush1.xpose.msra.mxu0 %v679
        %721 = vmatprep.subr.mxu0 0.0
        %722 = vmatpush1.xpose.msra.mxu0 %v682
        %723 = vmatprep.subr.mxu0 0.0
        %724 = vmatpush1.xpose.msra.mxu0 %v685
        %725 = vmatprep.subr.mxu0 0.0
        %726 = vmatpush1.xpose.msra.mxu0 %v688
        %727 = vmatprep.subr.mxu0 0.0
        %728 = vmatpush1.xpose.msra.mxu0 %v691
        %729 = vmatprep.subr.mxu0 0.0
        %730 = vmatpush1.xpose.msra.mxu0 %v694
        %731 = vmatprep.subr.mxu0 0.0
        %732 = vmatpush1.xpose.msra.mxu0 %v697
        %733 = vmatprep.subr.mxu0 0.0
        %734 = vmatpush1.xpose.msra.mxu0 %v700
        %735 = vmatprep.subr.mxu0 0.0
        %736 = vmatpush1.xpose.msra.mxu0 %v703
        %737 = vmatprep.subr.mxu0 0.0
        %738 = vmatpush1.xpose.msra.mxu0 0.0
        %739 = vmatprep.subr.mxu0 0.0
        %740 = vmatpush1.xpose.msra.mxu0 0.0
        %741 = vmatprep.subr.mxu0 0.0
        %742 = vmatpush1.xpose.msra.mxu0 0.0
        %743 = vmatprep.subr.mxu0 0.0
        %744 = vmatpush1.xpose.msra.mxu0 0.0
        %745 = vmatprep.subr.mxu0 0.0
        %746 = vmatpush1.xpose.msra.mxu0 0.0
        %747 = vmatprep.subr.mxu0 0.0
        %748 = vmatpush1.xpose.msra.mxu0 0.0
        %749 = vmatprep.subr.mxu0 0.0
        %750 = vmatpush1.xpose.msra.mxu0 0.0
        %751 = vmatprep.subr.mxu0 0.0
        %752 = vmatpush1.xpose.msra.mxu0 0.0
        %753 = vmatprep.subr.mxu0 0.0
        %754 = vmatpush1.xpose.msra.mxu0 0.0
        %755 = vmatprep.subr.mxu0 0.0
        %756 = vmatpush1.xpose.msra.mxu0 0.0
        %757 = vmatprep.subr.mxu0 0.0
        %758 = vmatpush1.xpose.msra.mxu0 0.0
        %759 = vmatprep.subr.mxu0 0.0
        %760 = vmatpush1.xpose.msra.mxu0 0.0
        %761 = vmatprep.subr.mxu0 0.0
        %762 = vmatpush1.xpose.msra.mxu0 0.0
        %763 = vmatprep.subr.mxu0 0.0
        %764 = vmatpush1.xpose.msra.mxu0 0.0
        %765 = vmatprep.subr.mxu0 0.0
        %766 = vmatpush1.xpose.msra.mxu0 0.0
        %767 = vmatprep.subr.mxu0 0.0
        %768 = vmatpush1.xpose.msra.mxu0 0.0
        %769 = vmatprep.mubr.f32.mxu0 0.0
        %770 = vmatmul.mubr.f32.gmra.mrb[0].mxu0 %v655
        %v771 = vpop.f32.mrb[0].mxu0
        %v772 = vadd.f32 %v653, %v771
        %v773 = vpop.f32.mrb[0].mxu0
        %774 = vdwg.mxu0
        %775 = vst [vmem:[%s272] sm:$0x1] %v772
        %s776 = sand.u32 %s182, 1
        %s777 = scalar_lea.sflag [#allocation4], %s776
        %s778 = sand.u32 %s182, 1
        %s779 = scalar_lea.vmem [#allocation3], %s778
        // Predicated region
        $region49: #{tpu_custom_call.1} parent=47 // pred_check
          %p780 = pneg %p192
        $region50: #{tpu_custom_call.1} parent=47 // pred_check_branch
          %782 = sbr.rel (%p780) target = $region52
        $region51: #{tpu_custom_call.1} parent=47 // pred_region
          %s784 = ssub.s32 16, 16
          %785 = vsyncadd %s777, %s784
          %s786 = smul.addr %s22, 16
          %s787 = scalar_lea.hbm %s7, %s786
          %s789 = sshll.u32 %s779, 4
          %s790 = int_to_ptr.vmem [resolvable:$true] %s789
          %792 = dma.vmem_to_hbm [thread:$0]  %s790, 16, %s787, %s777
        $region52: #{tpu_custom_call.1} parent=47 // pred_fallthru
          _
      $region48: #{tpu_custom_call.1} parent=5 // pred_fallthru
        _
      %p793 = scmp.le.s32.totalorder 2, %s17
      // Predicated region
      $region53: #{tpu_custom_call.1} parent=5 // pred_check
        %p794 = pneg %p793
      $region54: #{tpu_custom_call.1} parent=5 // pred_check_branch
        %796 = sbr.rel (%p794) target = $region56
      $region55: #{tpu_custom_call.1} parent=5 // pred_region
        %s797 = ssub.s32 %s17, 2
        // Predicated region
        $region57: #{tpu_custom_call.1} parent=55 // pred_check
          %p798 = pneg %p198
        $region58: #{tpu_custom_call.1} parent=55 // pred_check_branch
          %800 = sbr.rel (%p798) target = $region60
        $region59: #{tpu_custom_call.1} parent=55 // pred_region
          %s801 = sand.u32 %s183, 1
          %s802 = scalar_lea.sflag [#allocation4], %s801
          %s803 = sand.u32 %s183, 1
          %s804 = scalar_lea.vmem [#allocation3], %s803
          %805 = dma.done %s802, 16
        $region60: #{tpu_custom_call.1} parent=55 // pred_fallthru
          _
      $region56: #{tpu_custom_call.1} parent=5 // pred_fallthru
        _
    $region6: #{tpu_custom_call.1} parent=1 // loop_footer
      %s21 = sadd.s32 1, %s17
    $region7: #{tpu_custom_call.1} parent=1 // loop_footer_branch
      %16 = sbr.rel target = $region3
    $region8: #{tpu_custom_call.1} parent=1 // loop_exit
      _
    %806 = vsyncpa [#allocation4], 1
    %s807 = scalar_lea.sflag [#allocation4], 1
    %808 = vsyncpa %s807, 1

</llo_original>
